<compile_context>
chip_gen: v6e
topology: v6e:2x2x1
jax: 0.10.0
libtpu: 0.0.40
codegen_flags: <defaults>
</compile_context>

<pallas_src>
import functools
import math

import jax
import jax.numpy as jnp
from jax.experimental import pallas as pl
from jax.experimental.pallas import tpu as pltpu

_MIB = 1024 * 1024


def _round_up(a, b):
    return -(-a // b) * b


def _glamlp_kernel(x_ref, wgu_ref, wd_ref, o_ref, xb_ref, acc_ref, *, ti, nj):
    # x_ref  : (tm, Hp)   f32   activations (block resident across j)
    # wgu_ref: (Hp, 2*ti) bf16  [gate_tile_j | up_tile_j] of gate_proj.weight.T
    # wd_ref : (ti, Hp)   bf16  down_proj.weight.T tile
    # o_ref  : (tm, Hp)   bf16  output
    # xb_ref : (tm, Hp)   bf16  scratch: x cast once per row tile
    # acc_ref: (tm, Hp)   f32   reduction accumulator over the I axis
    j = pl.program_id(1)

    @pl.when(j == 0)
    def _():
        xb_ref[...] = x_ref[...].astype(jnp.bfloat16)

    xb = xb_ref[...]

    # Fused gate+up projection: one MXU matmul, bf16 operands, f32 accumulate.
    y = jnp.dot(xb, wgu_ref[...], preferred_element_type=jnp.float32)  # (tm, 2*ti)
    gate = y[:, :ti]
    up = y[:, ti:]
    z = gate * jax.nn.sigmoid(gate) * up                               # swiglu, f32

    # Down projection partial product (bf16 operands, f32 accumulate).
    partial = jnp.dot(z.astype(jnp.bfloat16), wd_ref[...],
                      preferred_element_type=jnp.float32)              # (tm, Hp)

    if nj == 1:
        o_ref[...] = partial.astype(o_ref.dtype)
    else:
        @pl.when(j == 0)
        def _():
            acc_ref[...] = partial            # first step: store only, no RMW

        @pl.when(jnp.logical_and(j > 0, j < nj - 1))
        def _():
            acc_ref[...] += partial

        @pl.when(j == nj - 1)
        def _():                              # fuse final add with cast+store
            o_ref[...] = (acc_ref[...] + partial).astype(o_ref.dtype)


def _chip_config():
    """(tm, ti, vmem_limit_bytes, row_align, two_tensorcores) per TPU generation."""
    try:
        kind = jax.devices()[0].device_kind.lower()
    except Exception:
        kind = ""
    if "v7" in kind or "7x" in kind:
        # 64 MiB VMEM, 2 TCs, ~320 flops/byte balance point
        return 384, 512, 56 * _MIB, 256, True
    if "v6" in kind:
        # 128 MiB VMEM, ~640 flops/byte balance point
        return 768, 512, 100 * _MIB, 256, False
    if "v5e" in kind or "v5 lite" in kind or "v5lite" in kind:
        # bandwidth-starved, 1 vst slot -> fatter ti to cut acc RMW steps
        return 384, 1024, 100 * _MIB, 128, False
    # unknown generation: conservative
    return 512, 512, 64 * _MIB, 128, False


def _vmem_estimate(tm, ti, hp):
    """Rough VMEM footprint (bytes) for one pipelined configuration."""
    x = 2 * tm * hp * 4              # fp32 x, double buffered
    xb = tm * hp * 2                 # bf16 x scratch
    wgu = 2 * hp * 2 * ti * 2        # fused gate|up tile, double buffered
    wd = 2 * ti * hp * 2             # down tile, double buffered
    acc = tm * hp * 4
    out = 2 * tm * hp * 2
    tmp = 3 * tm * 2 * ti * 4        # y / swiglu compiler temporaries
    return x + xb + wgu + wd + acc + out + tmp


def glamlp_pack_weights(gate_proj_w, down_proj_w, *, ti=None):
    """Pre-pack GLAMLP weights ONCE (call at init, outside the jit hot path).

    gate_proj_w : (2*I, H) fp32 nn.Linear weight
    down_proj_w : (H, I)   bf16 nn.Linear weight
    """
    two_i, H = gate_proj_w.shape
    assert two_i % 2 == 0
    inter = two_i // 2
    assert down_proj_w.shape == (H, inter)

    _, ti_default, _, _, _ = _chip_config()
    if ti is None:
        ti = ti_default
    ti = min(ti, inter)
    while ti > 128 and inter % ti:
        ti //= 2
    if inter % ti:
        ti = inter
    nb = inter // ti

    Hp = _round_up(H, 128)           # lane-dense output, full-width contraction

    wg = gate_proj_w[:inter].T       # (H, I) gate half of gate_proj.weight.T
    wu = gate_proj_w[inter:].T       # (H, I) up half
    if Hp != H:
        pad = ((0, Hp - H), (0, 0))
        wg = jnp.pad(wg, pad)
        wu = jnp.pad(wu, pad)
    # Blockwise interleave per ti tile: [gate_0 | up_0 | gate_1 | up_1 | ...]
    wgu = jnp.concatenate(
        [wg.reshape(Hp, nb, ti), wu.reshape(Hp, nb, ti)], axis=2
    ).reshape(Hp, 2 * inter).astype(jnp.bfloat16)

    wd = down_proj_w.T.astype(jnp.bfloat16)              # (I, H)
    if Hp != H:
        wd = jnp.pad(wd, ((0, 0), (0, Hp - H)))          # (I, Hp)

    return {"wgu": wgu, "wd": wd, "H": H, "Hp": Hp, "I": inter, "ti": ti}


def glamlp_forward(x, packed, *, tm=None):
    """Fused GLAMLP forward.

    x      : (B, T, H) fp32
    packed : result of glamlp_pack_weights
    returns: (B, T, H) bf16
    """
    H, Hp, inter, ti = packed["H"], packed["Hp"], packed["I"], packed["ti"]
    wgu, wd = packed["wgu"], packed["wd"]
    B, T, Hx = x.shape
    assert Hx == H

    tm_cfg, _, vmem_limit, row_align, two_tc = _chip_config()
    if tm is not None:
        tm_cfg = tm
    M = B * T

    # Row tile selection: MXU-friendly multiples for large M, padded-to-16 for
    # tiny M; on v7x keep >= 2 row tiles so both TensorCores stay busy.
    if M >= tm_cfg:
        tm_eff = _round_up(tm_cfg, row_align)
    else:
        tm_eff = _round_up(M, 16)
    if two_tc and M > 16:
        tm_eff = min(tm_eff, _round_up(-(-M // 2), 16))
    budget = vmem_limit if vmem_limit is not None else 32 * _MIB
    while tm_eff > 256 and _vmem_estimate(tm_eff, ti, Hp) > budget:
        tm_eff = _round_up(tm_eff // 2, 16)
    tm_eff = max(16, tm_eff)

    Mp = _round_up(M, tm_eff)
    nj = inter // ti
    n_row_tiles = Mp // tm_eff

    x2d = x.reshape(M, H)
    if Mp != M or Hp != H:
        x2d = jnp.pad(x2d, ((0, Mp - M), (0, Hp - H)))

    # Advisory cost: weights are re-streamed once per row tile.
    flops = 6 * Mp * Hp * inter
    bytes_accessed = (4 * Mp * Hp                                     # fp32 x
                      + n_row_tiles * (2 * Hp * 2 * inter + 2 * inter * Hp)
                      + 2 * Mp * Hp)                                  # bf16 out
    cost = pl.CostEstimate(flops=flops, transcendentals=Mp * inter,
                           bytes_accessed=bytes_accessed)

    kernel = functools.partial(_glamlp_kernel, ti=ti, nj=nj)

    cp_kwargs = dict(dimension_semantics=("parallel", "arbitrary"))
    if vmem_limit is not None:
        cp_kwargs["vmem_limit_bytes"] = vmem_limit

    out2d = pl.pallas_call(
        kernel,
        out_shape=jax.ShapeDtypeStruct((Mp, Hp), jnp.bfloat16),
        grid_spec=pltpu.PrefetchScalarGridSpec(
            num_scalar_prefetch=0,
            grid=(n_row_tiles, nj),                             # (rows, I-reduction)
            in_specs=[
                pl.BlockSpec((tm_eff, Hp), lambda i, j: (i, 0)),   # x rows (resident over j)
                pl.BlockSpec((Hp, 2 * ti), lambda i, j: (0, j)),   # fused gate|up tile
                pl.BlockSpec((ti, Hp), lambda i, j: (j, 0)),       # down tile
            ],
            out_specs=pl.BlockSpec((tm_eff, Hp), lambda i, j: (i, 0)),
            scratch_shapes=[
                pltpu.VMEM((tm_eff, Hp), jnp.bfloat16),   # x cast once per row tile
                pltpu.VMEM((tm_eff, Hp), jnp.float32),    # I-axis accumulator
            ],
        ),
        compiler_params=pltpu.CompilerParams(**cp_kwargs),
        cost_estimate=cost,
    )(x2d, wgu, wd)

    return out2d[:M, :H].reshape(B, T, H)


def glamlp_reference(x, gate_proj_w, down_proj_w):
    """Pure-JAX reference mirroring the PyTorch module numerics (fp32 gate_proj)."""
    inter = down_proj_w.shape[1]
    y = jnp.einsum("bth,ih->bti", x, gate_proj_w)                 # fp32
    gate, up = y[..., :inter], y[..., inter:]
    z = gate * jax.nn.sigmoid(gate) * up
    out = jnp.einsum("bti,hi->bth", z.astype(jnp.bfloat16), down_proj_w,
                     preferred_element_type=jnp.float32)
    return out.astype(jnp.bfloat16)


if __name__ == "__main__":
    # Module config: hidden_size=32 -> intermediate = 256*ceil(32*4*2/3/256) = 256
    hidden_size = 32
    hidden_ratio = 4
    intermediate_size = int(hidden_size * hidden_ratio * 2 / 3)
    intermediate_size = 256 * ((intermediate_size + 256 - 1) // 256)   # 256

    B, T = 2, 8
    key = jax.random.PRNGKey(0)
    kx, kg, kd = jax.random.split(key, 3)

    # Deterministic "parameters" (nn.Linear weights, bias=False).
    x = jax.random.normal(kx, (B, T, hidden_size), dtype=jnp.float32)
    gate_proj_w = (jax.random.normal(kg, (2 * intermediate_size, hidden_size),
                                     dtype=jnp.float32)
                   * (1.0 / math.sqrt(hidden_size)))
    down_proj_w = (jax.random.normal(kd, (hidden_size, intermediate_size),
                                     dtype=jnp.float32)
                   * (1.0 / math.sqrt(intermediate_size))).astype(jnp.bfloat16)

    # Pre-pack weights ONCE (outside the hot path).
    packed = glamlp_pack_weights(gate_proj_w, down_proj_w)
    jax.block_until_ready(packed["wgu"])
    jax.block_until_ready(packed["wd"])

    out = glamlp_forward(x, packed)
    out = jax.block_until_ready(out)

    ref = glamlp_reference(x, gate_proj_w, down_proj_w)
    err = float(jnp.max(jnp.abs(out.astype(jnp.float32) - ref.astype(jnp.float32))))
    scale = float(jnp.max(jnp.abs(ref.astype(jnp.float32)))) + 1e-6

    assert out.shape == (B, T, hidden_size) and out.dtype == jnp.bfloat16
    assert err / scale < 5e-2, f"mismatch vs reference: abs={err} rel={err / scale}"

    print("KERNEL_OK")
</pallas_src>

<mosaic_0001>
module attributes {stable_mosaic.version = 11 : i64} {
  func.func @_glamlp_kernel(%arg0: i32, %arg1: i32, %arg2: memref<16x128xf32, #tpu.memory_space<vmem>>, %arg3: memref<128x512xbf16, #tpu.memory_space<vmem>>, %arg4: memref<256x128xbf16, #tpu.memory_space<vmem>>, %arg5: memref<16x128xbf16, #tpu.memory_space<vmem>>, %arg6: memref<16x128xbf16, #tpu.memory_space<vmem>>, %arg7: memref<16x128xf32, #tpu.memory_space<vmem>>) attributes {dimension_semantics = [#tpu.dimension_semantics<parallel>, #tpu.dimension_semantics<arbitrary>], iteration_bounds = array<i64: 1, 1>, scalar_prefetch = 0 : i64, scratch_operands = 2 : i64, tpu.core_type = #tpu.core_type<tc>, window_params = [{transform_indices = @transform_0, window_bounds = array<i64: 16, 128>}, {transform_indices = @transform_1, window_bounds = array<i64: 128, 512>}, {transform_indices = @transform_2, window_bounds = array<i64: 256, 128>}, {transform_indices = @transform_3, window_bounds = array<i64: 16, 128>}]} {
    %c0_i32 = arith.constant 0 : i32
    %0 = arith.cmpi eq, %arg1, %c0_i32 : i32
    %1 = arith.extui %0 : i1 to i32
    %c0_i32_0 = arith.constant 0 : i32
    %2 = arith.cmpi ne, %1, %c0_i32_0 : i32
    scf.if %2 {
      %c0_10 = arith.constant 0 : index
      %c0_11 = arith.constant 0 : index
      %20 = vector.load %arg2[%c0_10, %c0_11] : memref<16x128xf32, #tpu.memory_space<vmem>>, vector<16x128xf32>
      %21 = arith.truncf %20 : vector<16x128xf32> to vector<16x128xbf16>
      %c0_12 = arith.constant 0 : index
      %c0_13 = arith.constant 0 : index
      %22 = vector.load %arg6[%c0_12, %c0_13] : memref<16x128xbf16, #tpu.memory_space<vmem>>, vector<16x128xbf16>
      tpu.vector_store %arg6[%c0_12, %c0_13], %21 {strides = array<i32>} : memref<16x128xbf16, #tpu.memory_space<vmem>>, vector<16x128xbf16>,
    } else {
    }
    %c0 = arith.constant 0 : index
    %c0_1 = arith.constant 0 : index
    %3 = vector.load %arg6[%c0, %c0_1] : memref<16x128xbf16, #tpu.memory_space<vmem>>, vector<16x128xbf16>
    %c0_2 = arith.constant 0 : index
    %c0_3 = arith.constant 0 : index
    %4 = vector.load %arg3[%c0_2, %c0_3] : memref<128x512xbf16, #tpu.memory_space<vmem>>, vector<128x512xbf16>
    %cst = arith.constant dense<0.000000e+00> : vector<16x512xf32>
    %5 = tpu.matmul %3, %4, %cst {dimension_numbers = #tpu.dot_dimension_numbers<[1], [0], [0], [1], [0, 0, 1, 1], [], []>} : vector<16x128xbf16>, vector<128x512xbf16>, vector<16x512xf32> -> vector<16x512xf32>
    %6 = vector.extract_strided_slice %5 {offsets = [0, 0], sizes = [16, 256], strides = [1, 1]} : vector<16x512xf32> to vector<16x256xf32>
    %7 = vector.extract_strided_slice %5 {offsets = [0, 256], sizes = [16, 256], strides = [1, 1]} : vector<16x512xf32> to vector<16x256xf32>
    %8 = arith.negf %6 : vector<16x256xf32>
    %9 = math.exp %8 : vector<16x256xf32>
    %cst_4 = arith.constant 1.000000e+00 : f32
    %10 = vector.broadcast %cst_4 : f32 to vector<16x256xf32>
    %11 = arith.addf %10, %9 : vector<16x256xf32>
    %12 = arith.divf %10, %11 : vector<16x256xf32>
    %13 = arith.mulf %6, %12 : vector<16x256xf32>
    %14 = arith.mulf %13, %7 : vector<16x256xf32>
    %15 = arith.truncf %14 : vector<16x256xf32> to vector<16x256xbf16>
    %c0_5 = arith.constant 0 : index
    %c0_6 = arith.constant 0 : index
    %16 = vector.load %arg4[%c0_5, %c0_6] : memref<256x128xbf16, #tpu.memory_space<vmem>>, vector<256x128xbf16>
    %cst_7 = arith.constant dense<0.000000e+00> : vector<16x128xf32>
    %17 = tpu.matmul %15, %16, %cst_7 {dimension_numbers = #tpu.dot_dimension_numbers<[1], [0], [0], [1], [0, 0, 1, 1], [], []>} : vector<16x256xbf16>, vector<256x128xbf16>, vector<16x128xf32> -> vector<16x128xf32>
    %18 = arith.truncf %17 : vector<16x128xf32> to vector<16x128xbf16>
    %c0_8 = arith.constant 0 : index
    %c0_9 = arith.constant 0 : index
    %19 = vector.load %arg5[%c0_8, %c0_9] : memref<16x128xbf16, #tpu.memory_space<vmem>>, vector<16x128xbf16>
    tpu.vector_store %arg5[%c0_8, %c0_9], %18 {strides = array<i32>} : memref<16x128xbf16, #tpu.memory_space<vmem>>, vector<16x128xbf16>,
    return
  }
  func.func @transform_0(%arg0: i32, %arg1: i32) -> (i32, i32) {
    %c0_i32 = arith.constant 0 : i32
    %c0_i32_0 = arith.constant 0 : i32
    return %arg0, %c0_i32 : i32, i32
  }
  func.func @transform_1(%arg0: i32, %arg1: i32) -> (i32, i32) {
    %c0_i32 = arith.constant 0 : i32
    %c0_i32_0 = arith.constant 0 : i32
    return %c0_i32, %arg1 : i32, i32
  }
  func.func @transform_2(%arg0: i32, %arg1: i32) -> (i32, i32) {
    %c0_i32 = arith.constant 0 : i32
    %c0_i32_0 = arith.constant 0 : i32
    return %arg1, %c0_i32 : i32, i32
  }
  func.func @transform_3(%arg0: i32, %arg1: i32) -> (i32, i32) {
    %c0_i32 = arith.constant 0 : i32
    %c0_i32_0 = arith.constant 0 : i32
    return %arg0, %c0_i32 : i32, i32
  }
}

</mosaic_0001>

<llo_original>
// kernel: tpu_custom_call.1
$region0: #{tpu_custom_call.1}
  #allocation0 [shape = 'u32[]', space=smem, size = 0x4, offset = 0x4, fixed_abs, tag = 'smem constant byte address 0x4 - core index']
  #allocation1 [shape = 'u32[144,128]{1,0:T(1,128)}', space=vmem, size = 0x12000, scoped, tag = 'internal scratch']
  #allocation2 [shape = 'bf16[16,128]{1,0:T(8,128)(2,1)}', space=vmem, size = 0x1000, scoped, tag = 'scratch operand']
  #allocation3 [shape = 'f32[16,128]{1,0:T(8,128)}', space=vmem, size = 0x2000, scoped, tag = 'scratch operand']
  %s0 = inlined_call_operand.hbm [shape: f32[16,128], index: 0, kind: input, shape index: {}]
  %s1 = inlined_call_operand.hbm [shape: bf16[128,512], index: 1, kind: input, shape index: {}]
  %s2 = inlined_call_operand.hbm [shape: bf16[256,128], index: 2, kind: input, shape index: {}]
  %s3 = inlined_call_operand.hbm [shape: bf16[16,128], index: 3, kind: output, shape index: {}]
  %s4 = sld [smem:[#allocation0]]
  $region38: #{tpu_custom_call.1} parent=0
    _
  %s6 = ssub.s32 1, %s4
  %s7 = scalar_select 0, %s6, %s4
  $region1: #{tpu_custom_call.1} parent=0
    #allocation4 [shape = 'u8[8192]{0}', space=vmem, size = 0x2000, scoped, tag = 'input window, operand 0, single buffered']
    #allocation5 [shape = 's32[1]{0}', space=sflag, size = 0x4, scoped, tag = 'scoped memory for tpu_custom_call.1']
    #allocation6 [shape = 's32[1]{0}', space=sflag, size = 0x4, scoped, tag = 'scoped memory for tpu_custom_call.1']
    #allocation7 [shape = 'u8[131072]{0}', space=vmem, size = 0x20000, scoped, tag = 'input window, operand 1, single buffered']
    #allocation8 [shape = 's32[1]{0}', space=sflag, size = 0x4, scoped, tag = 'scoped memory for tpu_custom_call.1']
    #allocation9 [shape = 'u8[65536]{0}', space=vmem, size = 0x10000, scoped, tag = 'input window, operand 2, single buffered']
    #allocation10 [shape = 'u8[4096]{0}', space=vmem, size = 0x1000, scoped, tag = 'output window, operand 0, single buffered']
    %8 = vsyncpa [#allocation5], 0
    %9 = vsyncpa [#allocation8], 0
    %10 = vsyncpa [#allocation6], 0
    // Predicated region
    $region2: #{tpu_custom_call.1} parent=1 // pred_check
      _
    $region3: #{tpu_custom_call.1} parent=1 // pred_check_branch
      %12 = sbr.rel (0) target = $region5
    $region4: #{tpu_custom_call.1} parent=1 // pred_region
      %s14 = ssub.s32 256, 256
      %15 = vsyncadd [#allocation5], %s14
      %s16 = sshll.u32 [#allocation4], 4
      %s17 = int_to_ptr.vmem [resolvable:$true] %s16
      %22 = dma.hbm_to_vmem [thread:$0]  %s0, 256, %s17, [#allocation5], 128, 128, 8
    $region5: #{tpu_custom_call.1} parent=1 // pred_fallthru
      _
    // Predicated region
    $region6: #{tpu_custom_call.1} parent=1 // pred_check
      _
    $region7: #{tpu_custom_call.1} parent=1 // pred_check_branch
      %24 = sbr.rel (0) target = $region9
    $region8: #{tpu_custom_call.1} parent=1 // pred_region
      %s26 = ssub.s32 4096, 4096
      %27 = vsyncadd [#allocation8], %s26
      %s28 = sshll.u32 [#allocation7], 4
      %s29 = int_to_ptr.vmem [resolvable:$true] %s28
      %34 = dma.hbm_to_vmem [thread:$0]  %s1, 4096, %s29, [#allocation8], 256, 256, 16
    $region9: #{tpu_custom_call.1} parent=1 // pred_fallthru
      _
    // Predicated region
    $region10: #{tpu_custom_call.1} parent=1 // pred_check
      _
    $region11: #{tpu_custom_call.1} parent=1 // pred_check_branch
      %36 = sbr.rel (0) target = $region13
    $region12: #{tpu_custom_call.1} parent=1 // pred_region
      %s38 = ssub.s32 2048, 2048
      %39 = vsyncadd [#allocation8], %s38
      %s40 = sshll.u32 [#allocation9], 4
      %s41 = int_to_ptr.vmem [resolvable:$true] %s40
      %46 = dma.hbm_to_vmem [thread:$0]  %s2, 2048, %s41, [#allocation8], 64, 64, 4
    $region13: #{tpu_custom_call.1} parent=1 // pred_fallthru
      _
    // Predicated region
    $region14: #{tpu_custom_call.1} parent=1 // pred_check
      _
    $region15: #{tpu_custom_call.1} parent=1 // pred_check_branch
      %48 = sbr.rel (0) target = $region17
    $region16: #{tpu_custom_call.1} parent=1 // pred_region
      %49 = dma.done [#allocation5], 256
    $region17: #{tpu_custom_call.1} parent=1 // pred_fallthru
      _
    // Predicated region
    $region18: #{tpu_custom_call.1} parent=1 // pred_check
      _
    $region19: #{tpu_custom_call.1} parent=1 // pred_check_branch
      %51 = sbr.rel (0) target = $region21
    $region20: #{tpu_custom_call.1} parent=1 // pred_region
      %52 = dma.done [#allocation8], 4096
    $region21: #{tpu_custom_call.1} parent=1 // pred_fallthru
      _
    // Predicated region
    $region22: #{tpu_custom_call.1} parent=1 // pred_check
      _
    $region23: #{tpu_custom_call.1} parent=1 // pred_check_branch
      %54 = sbr.rel (0) target = $region25
    $region24: #{tpu_custom_call.1} parent=1 // pred_region
      %55 = dma.done [#allocation8], 2048
    $region25: #{tpu_custom_call.1} parent=1 // pred_fallthru
      _
    %p57 = scmp.eq.s32.totalorder 0, 0
    // Predicated region
    $region26: #{tpu_custom_call.1} parent=1 // pred_check
      %p58 = pneg %p57
    $region27: #{tpu_custom_call.1} parent=1 // pred_check_branch
      %60 = sbr.rel (%p58) target = $region29
    $region28: #{tpu_custom_call.1} parent=1 // pred_region
      %v61 = vld [vmem:[#allocation4] sm:$0xff]
      %v62 = vld [vmem:[#allocation4 + $0x8] sm:$0xff]
      %v63 = vpack.c.bf16 %v62, %v61
      %v65 = vunpack.c.l.b16 %v63
      %v66 = vunpack.c.h.b16 %v63
      %v67 = vpack.c.b16 %v65, %v65
      %v68 = vpack.c.b16 %v66, %v66
      %71 = vst [vmem:[#allocation2] sm:$0xf] %v67
      %72 = vst [vmem:[#allocation2 + $0x4] sm:$0xf] %v68
    $region29: #{tpu_custom_call.1} parent=1 // pred_fallthru
      _
    %v73 = vld [vmem:[#allocation2] sm:$0xf]
    %v74 = vld [vmem:[#allocation2 + $0x4] sm:$0xf]
    %v75 = vld [vmem:[#allocation7] sm:$0xff]
    %v76 = vld [vmem:[#allocation7 + $0x8] sm:$0xff]
    %v77 = vld [vmem:[#allocation7 + $0x10] sm:$0xff]
    %v78 = vld [vmem:[#allocation7 + $0x18] sm:$0xff]
    %v79 = vld [vmem:[#allocation7 + $0x20] sm:$0xff]
    %v80 = vld [vmem:[#allocation7 + $0x28] sm:$0xff]
    %v81 = vld [vmem:[#allocation7 + $0x30] sm:$0xff]
    %v82 = vld [vmem:[#allocation7 + $0x38] sm:$0xff]
    %v83 = vld [vmem:[#allocation7 + $0x40] sm:$0xff]
    %v84 = vld [vmem:[#allocation7 + $0x48] sm:$0xff]
    %v85 = vld [vmem:[#allocation7 + $0x50] sm:$0xff]
    %v86 = vld [vmem:[#allocation7 + $0x58] sm:$0xff]
    %v87 = vld [vmem:[#allocation7 + $0x60] sm:$0xff]
    %v88 = vld [vmem:[#allocation7 + $0x68] sm:$0xff]
    %v89 = vld [vmem:[#allocation7 + $0x70] sm:$0xff]
    %v90 = vld [vmem:[#allocation7 + $0x78] sm:$0xff]
    %v91 = vld [vmem:[#allocation7 + $0x80] sm:$0xff]
    %v92 = vld [vmem:[#allocation7 + $0x88] sm:$0xff]
    %v93 = vld [vmem:[#allocation7 + $0x90] sm:$0xff]
    %v94 = vld [vmem:[#allocation7 + $0x98] sm:$0xff]
    %v95 = vld [vmem:[#allocation7 + $0xa0] sm:$0xff]
    %v96 = vld [vmem:[#allocation7 + $0xa8] sm:$0xff]
    %v97 = vld [vmem:[#allocation7 + $0xb0] sm:$0xff]
    %v98 = vld [vmem:[#allocation7 + $0xb8] sm:$0xff]
    %v99 = vld [vmem:[#allocation7 + $0xc0] sm:$0xff]
    %v100 = vld [vmem:[#allocation7 + $0xc8] sm:$0xff]
    %v101 = vld [vmem:[#allocation7 + $0xd0] sm:$0xff]
    %v102 = vld [vmem:[#allocation7 + $0xd8] sm:$0xff]
    %v103 = vld [vmem:[#allocation7 + $0xe0] sm:$0xff]
    %v104 = vld [vmem:[#allocation7 + $0xe8] sm:$0xff]
    %v105 = vld [vmem:[#allocation7 + $0xf0] sm:$0xff]
    %v106 = vld [vmem:[#allocation7 + $0xf8] sm:$0xff]
    %v109 = vunpack.c.l.b16 %v73
    %v110 = vunpack.c.l.b16 %v74
    %v111 = vpack.c.b16 %v110, %v109
    %v145 = vunpack.c.l.b16 %v75
    %v146 = vunpack.c.h.b16 %v75
    %v147 = vunpack.c.l.b16 %v76
    %v148 = vunpack.c.h.b16 %v76
    %v149 = vunpack.c.l.b16 %v77
    %v150 = vunpack.c.h.b16 %v77
    %v151 = vunpack.c.l.b16 %v78
    %v152 = vunpack.c.h.b16 %v78
    %v153 = vunpack.c.l.b16 %v79
    %v154 = vunpack.c.h.b16 %v79
    %v155 = vunpack.c.l.b16 %v80
    %v156 = vunpack.c.h.b16 %v80
    %v157 = vunpack.c.l.b16 %v81
    %v158 = vunpack.c.h.b16 %v81
    %v159 = vunpack.c.l.b16 %v82
    %v160 = vunpack.c.h.b16 %v82
    %v161 = vunpack.c.l.b16 %v83
    %v162 = vunpack.c.h.b16 %v83
    %v163 = vunpack.c.l.b16 %v84
    %v164 = vunpack.c.h.b16 %v84
    %v165 = vunpack.c.l.b16 %v85
    %v166 = vunpack.c.h.b16 %v85
    %v167 = vunpack.c.l.b16 %v86
    %v168 = vunpack.c.h.b16 %v86
    %v169 = vunpack.c.l.b16 %v87
    %v170 = vunpack.c.h.b16 %v87
    %v171 = vunpack.c.l.b16 %v88
    %v172 = vunpack.c.h.b16 %v88
    %v173 = vunpack.c.l.b16 %v89
    %v174 = vunpack.c.h.b16 %v89
    %v175 = vunpack.c.l.b16 %v90
    %v176 = vunpack.c.h.b16 %v90
    %v177 = vunpack.c.l.b16 %v91
    %v178 = vunpack.c.h.b16 %v91
    %v179 = vunpack.c.l.b16 %v92
    %v180 = vunpack.c.h.b16 %v92
    %v181 = vunpack.c.l.b16 %v93
    %v182 = vunpack.c.h.b16 %v93
    %v183 = vunpack.c.l.b16 %v94
    %v184 = vunpack.c.h.b16 %v94
    %v185 = vunpack.c.l.b16 %v95
    %v186 = vunpack.c.h.b16 %v95
    %v187 = vunpack.c.l.b16 %v96
    %v188 = vunpack.c.h.b16 %v96
    %v189 = vunpack.c.l.b16 %v97
    %v190 = vunpack.c.h.b16 %v97
    %v191 = vunpack.c.l.b16 %v98
    %v192 = vunpack.c.h.b16 %v98
    %v193 = vunpack.c.l.b16 %v99
    %v194 = vunpack.c.h.b16 %v99
    %v195 = vunpack.c.l.b16 %v100
    %v196 = vunpack.c.h.b16 %v100
    %v197 = vunpack.c.l.b16 %v101
    %v198 = vunpack.c.h.b16 %v101
    %v199 = vunpack.c.l.b16 %v102
    %v200 = vunpack.c.h.b16 %v102
    %v201 = vunpack.c.l.b16 %v103
    %v202 = vunpack.c.h.b16 %v103
    %v203 = vunpack.c.l.b16 %v104
    %v204 = vunpack.c.h.b16 %v104
    %v205 = vunpack.c.l.b16 %v105
    %v206 = vunpack.c.h.b16 %v105
    %v207 = vunpack.c.l.b16 %v106
    %v208 = vunpack.c.h.b16 %v106
    %v209 = vpack.c.b16 %v149, %v145
    %v210 = vpack.c.b16 %v150, %v146
    %v211 = vpack.c.b16 %v151, %v147
    %v212 = vpack.c.b16 %v152, %v148
    %v213 = vpack.c.b16 %v157, %v153
    %v214 = vpack.c.b16 %v158, %v154
    %v215 = vpack.c.b16 %v159, %v155
    %v216 = vpack.c.b16 %v160, %v156
    %v217 = vpack.c.b16 %v165, %v161
    %v218 = vpack.c.b16 %v166, %v162
    %v219 = vpack.c.b16 %v167, %v163
    %v220 = vpack.c.b16 %v168, %v164
    %v221 = vpack.c.b16 %v173, %v169
    %v222 = vpack.c.b16 %v174, %v170
    %v223 = vpack.c.b16 %v175, %v171
    %v224 = vpack.c.b16 %v176, %v172
    %v225 = vpack.c.b16 %v181, %v177
    %v226 = vpack.c.b16 %v182, %v178
    %v227 = vpack.c.b16 %v183, %v179
    %v228 = vpack.c.b16 %v184, %v180
    %v229 = vpack.c.b16 %v189, %v185
    %v230 = vpack.c.b16 %v190, %v186
    %v231 = vpack.c.b16 %v191, %v187
    %v232 = vpack.c.b16 %v192, %v188
    %v233 = vpack.c.b16 %v197, %v193
    %v234 = vpack.c.b16 %v198, %v194
    %v235 = vpack.c.b16 %v199, %v195
    %v236 = vpack.c.b16 %v200, %v196
    %v237 = vpack.c.b16 %v205, %v201
    %v238 = vpack.c.b16 %v206, %v202
    %v239 = vpack.c.b16 %v207, %v203
    %v240 = vpack.c.b16 %v208, %v204
    %273 = vmatprep.subr.bf16.mxu0 %v238
    %274 = vmatpush1.bf16.msra.mxu0 %v237
    %275 = vmatprep.subr.bf16.mxu0 %v234
    %276 = vmatpush1.bf16.msra.mxu0 %v233
    %277 = vmatprep.subr.bf16.mxu0 %v230
    %278 = vmatpush1.bf16.msra.mxu0 %v229
    %279 = vmatprep.subr.bf16.mxu0 %v226
    %280 = vmatpush1.bf16.msra.mxu0 %v225
    %281 = vmatprep.subr.bf16.mxu0 %v222
    %282 = vmatpush1.bf16.msra.mxu0 %v221
    %283 = vmatprep.subr.bf16.mxu0 %v218
    %284 = vmatpush1.bf16.msra.mxu0 %v217
    %285 = vmatprep.subr.bf16.mxu0 %v214
    %286 = vmatpush1.bf16.msra.mxu0 %v213
    %287 = vmatprep.subr.bf16.mxu0 %v210
    %288 = vmatpush1.bf16.msra.mxu0 %v209
    %289 = vmatprep.subr.bf16.mxu0 0
    %290 = vmatpush2.bf16.msra.mxu0 0
    %291 = vmatprep.subr.bf16.mxu0 0
    %292 = vmatpush2.bf16.msra.mxu0 0
    %293 = vmatprep.subr.bf16.mxu0 0
    %294 = vmatpush2.bf16.msra.mxu0 0
    %295 = vmatprep.subr.bf16.mxu0 0
    %296 = vmatpush2.bf16.msra.mxu0 0
    %297 = vmatprep.subr.bf16.mxu0 0
    %298 = vmatpush2.bf16.msra.mxu0 0
    %299 = vmatprep.subr.bf16.mxu0 0
    %300 = vmatpush2.bf16.msra.mxu0 0
    %301 = vmatprep.subr.bf16.mxu0 0
    %302 = vmatpush2.bf16.msra.mxu0 0
    %303 = vmatprep.subr.bf16.mxu0 0
    %304 = vmatpush2.bf16.msra.mxu0 0
    %305 = vmatprep.mubr.bf16.mxu0 0
    %306 = vmatmul.mubr.bf16.gmra.mxu0 %v111
    %v307 = vpop.f32.mrf.mxu0
    %v308 = vadd.f32 0.0, %v307
    %v309 = vpop.f32.mrf.mxu0
    %v310 = vadd.f32 0.0, %v309
    %v311 = vpop.f32.mrf.mxu0
    %v312 = vadd.f32 0.0, %v311
    %v313 = vpop.f32.mrf.mxu0
    %v314 = vadd.f32 0.0, %v313
    %315 = vdwg.mxu0
    %316 = vmatprep.subr.bf16.mxu0 %v240
    %317 = vmatpush1.bf16.msra.mxu0 %v239
    %318 = vmatprep.subr.bf16.mxu0 %v236
    %319 = vmatpush1.bf16.msra.mxu0 %v235
    %320 = vmatprep.subr.bf16.mxu0 %v232
    %321 = vmatpush1.bf16.msra.mxu0 %v231
    %322 = vmatprep.subr.bf16.mxu0 %v228
    %323 = vmatpush1.bf16.msra.mxu0 %v227
    %324 = vmatprep.subr.bf16.mxu0 %v224
    %325 = vmatpush1.bf16.msra.mxu0 %v223
    %326 = vmatprep.subr.bf16.mxu0 %v220
    %327 = vmatpush1.bf16.msra.mxu0 %v219
    %328 = vmatprep.subr.bf16.mxu0 %v216
    %329 = vmatpush1.bf16.msra.mxu0 %v215
    %330 = vmatprep.subr.bf16.mxu0 %v212
    %331 = vmatpush1.bf16.msra.mxu0 %v211
    %332 = vmatprep.subr.bf16.mxu0 0
    %333 = vmatpush2.bf16.msra.mxu0 0
    %334 = vmatprep.subr.bf16.mxu0 0
    %335 = vmatpush2.bf16.msra.mxu0 0
    %336 = vmatprep.subr.bf16.mxu0 0
    %337 = vmatpush2.bf16.msra.mxu0 0
    %338 = vmatprep.subr.bf16.mxu0 0
    %339 = vmatpush2.bf16.msra.mxu0 0
    %340 = vmatprep.subr.bf16.mxu0 0
    %341 = vmatpush2.bf16.msra.mxu0 0
    %342 = vmatprep.subr.bf16.mxu0 0
    %343 = vmatpush2.bf16.msra.mxu0 0
    %344 = vmatprep.subr.bf16.mxu0 0
    %345 = vmatpush2.bf16.msra.mxu0 0
    %346 = vmatprep.subr.bf16.mxu0 0
    %347 = vmatpush2.bf16.msra.mxu0 0
    %348 = vmatprep.mubr.bf16.mxu0 0
    %349 = vmatmul.mubr.bf16.gmra.mxu0 %v111
    %v350 = vpop.f32.mrf.mxu0
    %v351 = vadd.f32 0.0, %v350
    %v352 = vpop.f32.mrf.mxu0
    %v353 = vadd.f32 0.0, %v352
    %v354 = vpop.f32.mrf.mxu0
    %v355 = vadd.f32 0.0, %v354
    %v356 = vpop.f32.mrf.mxu0
    %v357 = vadd.f32 0.0, %v356
    %358 = vdwg.mxu0
    %v359 = vxor.u32 %v308, 2147483648
    %v360 = vxor.u32 %v310, 2147483648
    %v361 = vxor.u32 %v312, 2147483648
    %v362 = vxor.u32 %v314, 2147483648
    %v363 = vmul.f32 %v359, 1.442695
    %v364 = vpow.pop %v363
    %v365 = vmul.f32 %v360, 1.442695
    %v366 = vpow.pop %v365
    %v367 = vmul.f32 %v361, 1.442695
    %v368 = vpow.pop %v367
    %v369 = vmul.f32 %v362, 1.442695
    %v370 = vpow.pop %v369
    %v371 = vadd.f32 %v364, 1.0
    %v372 = vadd.f32 %v366, 1.0
    %v373 = vadd.f32 %v368, 1.0
    %v374 = vadd.f32 %v370, 1.0
    %v375 = vrcp.pop %v371
    %v376 = vmul.f32 1.0, %v375
    %v377 = vrcp.pop %v372
    %v378 = vmul.f32 1.0, %v377
    %v379 = vrcp.pop %v373
    %v380 = vmul.f32 1.0, %v379
    %v381 = vrcp.pop %v374
    %v382 = vmul.f32 1.0, %v381
    %v383 = vmul.f32 %v308, %v376
    %v384 = vmul.f32 %v310, %v378
    %v385 = vmul.f32 %v312, %v380
    %v386 = vmul.f32 %v314, %v382
    %v387 = vmul.f32 %v383, %v351
    %v388 = vmul.f32 %v384, %v353
    %v389 = vmul.f32 %v385, %v355
    %v390 = vmul.f32 %v386, %v357
    %v391 = vpack.c.bf16 %v389, %v387
    %v392 = vpack.c.bf16 %v390, %v388
    %v393 = vld [vmem:[#allocation9] sm:$0xf]
    %v394 = vld [vmem:[#allocation9 + $0x4] sm:$0xf]
    %v395 = vld [vmem:[#allocation9 + $0x8] sm:$0xf]
    %v396 = vld [vmem:[#allocation9 + $0xc] sm:$0xf]
    %v397 = vld [vmem:[#allocation9 + $0x10] sm:$0xf]
    %v398 = vld [vmem:[#allocation9 + $0x14] sm:$0xf]
    %v399 = vld [vmem:[#allocation9 + $0x18] sm:$0xf]
    %v400 = vld [vmem:[#allocation9 + $0x1c] sm:$0xf]
    %v401 = vld [vmem:[#allocation9 + $0x20] sm:$0xf]
    %v402 = vld [vmem:[#allocation9 + $0x24] sm:$0xf]
    %v403 = vld [vmem:[#allocation9 + $0x28] sm:$0xf]
    %v404 = vld [vmem:[#allocation9 + $0x2c] sm:$0xf]
    %v405 = vld [vmem:[#allocation9 + $0x30] sm:$0xf]
    %v406 = vld [vmem:[#allocation9 + $0x34] sm:$0xf]
    %v407 = vld [vmem:[#allocation9 + $0x38] sm:$0xf]
    %v408 = vld [vmem:[#allocation9 + $0x3c] sm:$0xf]
    %v409 = vld [vmem:[#allocation9 + $0x40] sm:$0xf]
    %v410 = vld [vmem:[#allocation9 + $0x44] sm:$0xf]
    %v411 = vld [vmem:[#allocation9 + $0x48] sm:$0xf]
    %v412 = vld [vmem:[#allocation9 + $0x4c] sm:$0xf]
    %v413 = vld [vmem:[#allocation9 + $0x50] sm:$0xf]
    %v414 = vld [vmem:[#allocation9 + $0x54] sm:$0xf]
    %v415 = vld [vmem:[#allocation9 + $0x58] sm:$0xf]
    %v416 = vld [vmem:[#allocation9 + $0x5c] sm:$0xf]
    %v417 = vld [vmem:[#allocation9 + $0x60] sm:$0xf]
    %v418 = vld [vmem:[#allocation9 + $0x64] sm:$0xf]
    %v419 = vld [vmem:[#allocation9 + $0x68] sm:$0xf]
    %v420 = vld [vmem:[#allocation9 + $0x6c] sm:$0xf]
    %v421 = vld [vmem:[#allocation9 + $0x70] sm:$0xf]
    %v422 = vld [vmem:[#allocation9 + $0x74] sm:$0xf]
    %v423 = vld [vmem:[#allocation9 + $0x78] sm:$0xf]
    %v424 = vld [vmem:[#allocation9 + $0x7c] sm:$0xf]
    %v457 = vunpack.c.l.b16 %v393
    %v458 = vunpack.c.l.b16 %v394
    %v459 = vunpack.c.l.b16 %v395
    %v460 = vunpack.c.l.b16 %v396
    %v461 = vunpack.c.l.b16 %v397
    %v462 = vunpack.c.l.b16 %v398
    %v463 = vunpack.c.l.b16 %v399
    %v464 = vunpack.c.l.b16 %v400
    %v465 = vunpack.c.l.b16 %v401
    %v466 = vunpack.c.l.b16 %v402
    %v467 = vunpack.c.l.b16 %v403
    %v468 = vunpack.c.l.b16 %v404
    %v469 = vunpack.c.l.b16 %v405
    %v470 = vunpack.c.l.b16 %v406
    %v471 = vunpack.c.l.b16 %v407
    %v472 = vunpack.c.l.b16 %v408
    %v473 = vunpack.c.l.b16 %v409
    %v474 = vunpack.c.l.b16 %v410
    %v475 = vunpack.c.l.b16 %v411
    %v476 = vunpack.c.l.b16 %v412
    %v477 = vunpack.c.l.b16 %v413
    %v478 = vunpack.c.l.b16 %v414
    %v479 = vunpack.c.l.b16 %v415
    %v480 = vunpack.c.l.b16 %v416
    %v481 = vunpack.c.l.b16 %v417
    %v482 = vunpack.c.l.b16 %v418
    %v483 = vunpack.c.l.b16 %v419
    %v484 = vunpack.c.l.b16 %v420
    %v485 = vunpack.c.l.b16 %v421
    %v486 = vunpack.c.l.b16 %v422
    %v487 = vunpack.c.l.b16 %v423
    %v488 = vunpack.c.l.b16 %v424
    %v489 = vpack.c.b16 %v458, %v457
    %v490 = vpack.c.b16 %v460, %v459
    %v491 = vpack.c.b16 %v462, %v461
    %v492 = vpack.c.b16 %v464, %v463
    %v493 = vpack.c.b16 %v466, %v465
    %v494 = vpack.c.b16 %v468, %v467
    %v495 = vpack.c.b16 %v470, %v469
    %v496 = vpack.c.b16 %v472, %v471
    %v497 = vpack.c.b16 %v474, %v473
    %v498 = vpack.c.b16 %v476, %v475
    %v499 = vpack.c.b16 %v478, %v477
    %v500 = vpack.c.b16 %v480, %v479
    %v501 = vpack.c.b16 %v482, %v481
    %v502 = vpack.c.b16 %v484, %v483
    %v503 = vpack.c.b16 %v486, %v485
    %v504 = vpack.c.b16 %v488, %v487
    %521 = vmatprep.subr.bf16.mxu0 0
    %522 = vmatpush1.bf16.msra.mxu0 %v496
    %523 = vmatprep.subr.bf16.mxu0 0
    %524 = vmatpush1.bf16.msra.mxu0 %v495
    %525 = vmatprep.subr.bf16.mxu0 0
    %526 = vmatpush1.bf16.msra.mxu0 %v494
    %527 = vmatprep.subr.bf16.mxu0 0
    %528 = vmatpush1.bf16.msra.mxu0 %v493
    %529 = vmatprep.subr.bf16.mxu0 0
    %530 = vmatpush1.bf16.msra.mxu0 %v492
    %531 = vmatprep.subr.bf16.mxu0 0
    %532 = vmatpush1.bf16.msra.mxu0 %v491
    %533 = vmatprep.subr.bf16.mxu0 0
    %534 = vmatpush1.bf16.msra.mxu0 %v490
    %535 = vmatprep.subr.bf16.mxu0 0
    %536 = vmatpush1.bf16.msra.mxu0 %v489
    %537 = vmatprep.subr.bf16.mxu0 0
    %538 = vmatpush2.bf16.msra.mxu0 %v504
    %539 = vmatprep.subr.bf16.mxu0 0
    %540 = vmatpush2.bf16.msra.mxu0 %v503
    %541 = vmatprep.subr.bf16.mxu0 0
    %542 = vmatpush2.bf16.msra.mxu0 %v502
    %543 = vmatprep.subr.bf16.mxu0 0
    %544 = vmatpush2.bf16.msra.mxu0 %v501
    %545 = vmatprep.subr.bf16.mxu0 0
    %546 = vmatpush2.bf16.msra.mxu0 %v500
    %547 = vmatprep.subr.bf16.mxu0 0
    %548 = vmatpush2.bf16.msra.mxu0 %v499
    %549 = vmatprep.subr.bf16.mxu0 0
    %550 = vmatpush2.bf16.msra.mxu0 %v498
    %551 = vmatprep.subr.bf16.mxu0 0
    %552 = vmatpush2.bf16.msra.mxu0 %v497
    %553 = vmatprep.mubr.bf16.mxu0 %v392
    %554 = vmatmul.mubr.bf16.gmra.mxu0 %v391
    %v555 = vpop.f32.mrf.mxu0
    %v556 = vadd.f32 0.0, %v555
    %v557 = vpop.f32.mrf.mxu0
    %v558 = vpop.f32.mrf.mxu0
    %v559 = vadd.f32 0.0, %v558
    %v560 = vpop.f32.mrf.mxu0
    %561 = vdwg.mxu0
    %v562 = vpack.c.bf16 %v559, %v556
    %v564 = vunpack.c.l.b16 %v562
    %v565 = vunpack.c.h.b16 %v562
    %v566 = vpack.c.b16 %v564, %v564
    %v567 = vpack.c.b16 %v565, %v565
    %570 = vst [vmem:[#allocation10] sm:$0xf] %v566
    %571 = vst [vmem:[#allocation10 + $0x4] sm:$0xf] %v567
    // Predicated region
    $region30: #{tpu_custom_call.1} parent=1 // pred_check
      _
    $region31: #{tpu_custom_call.1} parent=1 // pred_check_branch
      %573 = sbr.rel (0) target = $region33
    $region32: #{tpu_custom_call.1} parent=1 // pred_region
      %s575 = ssub.s32 128, 128
      %576 = vsyncadd [#allocation6], %s575
      %s577 = sshll.u32 [#allocation10], 4
      %s578 = int_to_ptr.vmem [resolvable:$true] %s577
      %583 = dma.vmem_to_hbm [thread:$0]  %s578, 128, %s3, [#allocation6], 64, 64, 4
    $region33: #{tpu_custom_call.1} parent=1 // pred_fallthru
      _
    // Predicated region
    $region34: #{tpu_custom_call.1} parent=1 // pred_check
      _
    $region35: #{tpu_custom_call.1} parent=1 // pred_check_branch
      %585 = sbr.rel (0) target = $region37
    $region36: #{tpu_custom_call.1} parent=1 // pred_region
      %586 = dma.done [#allocation6], 128
    $region37: #{tpu_custom_call.1} parent=1 // pred_fallthru
      _
    %587 = vsyncpa [#allocation5], 1
    %588 = vsyncpa [#allocation8], 1
    %589 = vsyncpa [#allocation6], 1

</llo_original>
